<compile_context>
chip_gen: v6e
topology: v6e:2x2x1
jax: 0.10.0
libtpu: 0.0.40
codegen_flags: <defaults>
</compile_context>

<pallas_src>
import functools

import jax
import jax.numpy as jnp
from jax import lax
from jax.experimental import pallas as pl
from jax.experimental.pallas import tpu as pltpu


# ---------------------------------------------------------------------------
# Helpers
# ---------------------------------------------------------------------------
def _pow_static(x, gamma):
    """x ** gamma with a static exponent.

    Integer gamma (the common case, default 2.0) lowers to VALU multiplies via
    exponentiation-by-squaring instead of exp(gamma*log(x)) on the EUP; a float
    gamma falls back to jnp.power on a clamped, non-negative base.
    """
    g = float(gamma)
    if g == round(g) and 0.0 <= g <= 8.0:
        n = int(round(g))
        if n == 0:
            return jnp.ones_like(x)
        result = None
        base = x
        while n:
            if n & 1:
                result = base if result is None else result * base
            n >>= 1
            if n:
                base = base * base
        return result
    return jnp.power(jnp.maximum(x, 0.0), g)


def _pick_tile_rows(rows, cols, itemsize=4, max_rows=4096, budget_bytes=2 << 20):
    """Rows per tile: as large as possible but <= ~2 MiB per input per buffer so the
    double-buffered tiles stay well under the default scoped VMEM on v5e/v6e/v7x."""
    cap = max(1, budget_bytes // max(1, cols * itemsize))
    tb = min(rows, max_rows, cap)
    if tb >= rows:
        return rows                       # single full-array tile (always legal)
    # Sub-tiling: keep a multiple of 32 (legal sublane tiling for f32/bf16/int8).
    return min(rows, max(32, (tb // 32) * 32))


# ---------------------------------------------------------------------------
# Kernels
# ---------------------------------------------------------------------------
def _softmax_focal_kernel(logits_ref, target_ref, out_ref, acc_ref, *,
                          alpha, gamma, eps, total_rows, tile_rows, denom):
    i = pl.program_id(0)

    @pl.when(i == 0)
    def _init():
        acc_ref[...] = jnp.zeros_like(acc_ref)

    x = logits_ref[...]                       # (TB, C) f32
    t = target_ref[...]                       # (TB, 1) i32

    # Mask for the ragged last tile; neutralise padded rows BEFORE transcendentals.
    row_ids = i * tile_rows + lax.broadcasted_iota(jnp.int32, (tile_rows, 1), 0)
    valid = row_ids < total_rows              # (TB, 1) bool
    x = jnp.where(valid, x, 0.0)
    t = jnp.where(valid, t, 0)

    # Only the row-wise exp touches the full tile.
    m = jnp.max(x, axis=-1, keepdims=True)                        # (TB, 1)
    s = jnp.sum(jnp.exp(x - m), axis=-1, keepdims=True)           # (TB, 1)

    # Gather the target-class logit, then do log/pow on (TB, 1) only.
    cls_ids = lax.broadcasted_iota(jnp.int32, x.shape, 1)
    x_t = jnp.sum(jnp.where(cls_ids == t, x, 0.0), axis=-1, keepdims=True)
    log_p_t = (x_t - m) - jnp.log(s)                              # (TB, 1)
    p_t = jnp.exp(log_p_t)

    focal_w = _pow_static(jnp.maximum(1.0 - p_t, 0.0), gamma)
    loss_row = -alpha * focal_w * jnp.log(p_t + eps)              # (TB, 1)
    loss_row = loss_row * valid.astype(jnp.float32)

    acc_ref[...] += jnp.sum(loss_row, axis=0, keepdims=True)

    @pl.when(i == pl.num_programs(0) - 1)
    def _finalize():
        out_ref[...] = acc_ref[...] * (1.0 / float(denom))


def _sigmoid_focal_kernel(logits_ref, target_ref, out_ref, acc_ref, *,
                          alpha, gamma, eps, total_rows, tile_rows, denom):
    i = pl.program_id(0)

    @pl.when(i == 0)
    def _init():
        acc_ref[...] = jnp.zeros_like(acc_ref)

    x = logits_ref[...]                                  # (TB, W) f32
    mh = target_ref[...].astype(jnp.float32)             # bf16 -> f32 (VPU cast)

    row_ids = i * tile_rows + lax.broadcasted_iota(jnp.int32, (tile_rows, 1), 0)
    valid = row_ids < total_rows                         # (TB, 1) bool
    x = jnp.where(valid, x, 0.0)
    mh = jnp.where(valid, mh, 0.0)

    p = jax.nn.sigmoid(x)
    pos = -alpha * mh * _pow_static(1.0 - p, gamma) * jnp.log(p + eps)
    neg = -(1.0 - alpha) * (1.0 - mh) * _pow_static(p, gamma) * jnp.log(1.0 - p + eps)
    loss = (pos + neg) * valid.astype(jnp.float32)

    acc_ref[...] += jnp.sum(jnp.sum(loss, axis=1, keepdims=True),
                            axis=0, keepdims=True)

    @pl.when(i == pl.num_programs(0) - 1)
    def _finalize():
        out_ref[...] = acc_ref[...] * (1.0 / float(denom))


# ---------------------------------------------------------------------------
# pallas_call plumbing
# ---------------------------------------------------------------------------
def _focal_pallas_call(kernel_fn, x2, t2, rows, cols, tile_rows, denom,
                       alpha, gamma, eps):
    num_tiles = -(-rows // tile_rows)
    kernel = functools.partial(
        kernel_fn, alpha=float(alpha), gamma=float(gamma), eps=float(eps),
        total_rows=rows, tile_rows=tile_rows, denom=denom)
    out = pl.pallas_call(
        kernel,
        out_shape=jax.ShapeDtypeStruct((1, 1), jnp.float32),
        grid=(num_tiles,),
        in_specs=[pl.BlockSpec((tile_rows, cols), lambda i: (i, 0)),
                  pl.BlockSpec((tile_rows, t2.shape[1]), lambda i: (i, 0))],
        out_specs=pl.BlockSpec((1, 1), lambda i: (0, 0)),
        scratch_shapes=[pltpu.VMEM((1, 1), jnp.float32)],
        compiler_params=pltpu.CompilerParams(
            dimension_semantics=("arbitrary",)),
    )(x2, t2)
    return out[0, 0]


# ---------------------------------------------------------------------------
# Wrapper (mirrors the PyTorch module API)
# ---------------------------------------------------------------------------
class FocalLoss:
    def __init__(self, num_labels, activation_type="softmax",
                 gamma=2.0, alpha=0.25, epsilon=1e-09, tile_rows=None):
        self.num_labels = num_labels
        self.gamma = float(gamma)
        self.alpha = float(alpha)
        self.epsilon = float(epsilon)
        self.activation_type = activation_type
        self._tile_rows = tile_rows          # optional override (testing / tuning)

    def __call__(self, logits, target):
        B, C = logits.shape
        assert C == self.num_labels
        logits = logits.astype(jnp.float32)

        if self.activation_type == "softmax":
            t2 = target.reshape(B, 1).astype(jnp.int32)
            tb = self._tile_rows or _pick_tile_rows(B, C)
            tb = min(tb, B)
            return _focal_pallas_call(_softmax_focal_kernel, logits, t2,
                                      B, C, tb, B,
                                      self.alpha, self.gamma, self.epsilon)
        elif self.activation_type == "sigmoid":
            # Lane-dense flatten when free (contiguous reshape, no extra HBM pass).
            if (B * C) % 128 == 0 and C < 128:
                rows, cols = (B * C) // 128, 128
            else:
                rows, cols = B, C
            x2 = logits.reshape(rows, cols)
            t2 = target.astype(jnp.bfloat16).reshape(rows, cols)   # exact for 0/1
            tb = self._tile_rows or _pick_tile_rows(rows, cols)
            tb = min(tb, rows)
            return _focal_pallas_call(_sigmoid_focal_kernel, x2, t2,
                                      rows, cols, tb, B * C,
                                      self.alpha, self.gamma, self.epsilon)
        else:
            raise ValueError(f"unknown activation_type {self.activation_type}")


# ---------------------------------------------------------------------------
# Pure-JAX references (for correctness check)
# ---------------------------------------------------------------------------
def _ref_softmax_focal(logits, target, alpha, gamma, eps, num_labels):
    one_hot = jax.nn.one_hot(target, num_labels, dtype=jnp.float32)
    p = jax.nn.softmax(logits.astype(jnp.float32), axis=-1)
    loss = -alpha * one_hot * jnp.power(1.0 - p, gamma) * jnp.log(p + eps)
    return jnp.mean(jnp.sum(loss, axis=1))


def _ref_sigmoid_focal(logits, target, alpha, gamma, eps):
    p = jax.nn.sigmoid(logits.astype(jnp.float32))
    mh = target.astype(jnp.float32)
    loss = -alpha * mh * jnp.power(1.0 - p, gamma) * jnp.log(p + eps)
    loss = loss + (-(1.0 - alpha) * (1.0 - mh) * jnp.power(p, gamma) * jnp.log(1.0 - p + eps))
    return jnp.mean(loss)


# ---------------------------------------------------------------------------
if __name__ == "__main__":
    key = jax.random.PRNGKey(0)
    B, num_labels = 8, 16

    k1, k2, k3 = jax.random.split(key, 3)
    logits = jax.random.normal(k1, (B, num_labels), dtype=jnp.float32)
    target_idx = jax.random.randint(k2, (B,), 0, num_labels, dtype=jnp.int32)
    target_multi = (jax.random.uniform(k3, (B, num_labels)) > 0.5).astype(jnp.float32)

    # 1) softmax variant (module default), single tile
    fl_softmax = FocalLoss(num_labels=num_labels, activation_type="softmax")
    out_softmax = jax.block_until_ready(fl_softmax(logits, target_idx))
    ref_softmax = _ref_softmax_focal(logits, target_idx, 0.25, 2.0, 1e-9, num_labels)
    assert jnp.allclose(out_softmax, ref_softmax, rtol=1e-5, atol=1e-6), (
        out_softmax, ref_softmax)

    # 2) sigmoid variant (lane-dense flattened path), single tile
    fl_sigmoid = FocalLoss(num_labels=num_labels, activation_type="sigmoid")
    out_sigmoid = jax.block_until_ready(fl_sigmoid(logits, target_multi))
    ref_sigmoid = _ref_sigmoid_focal(logits, target_multi, 0.25, 2.0, 1e-9)
    assert jnp.allclose(out_sigmoid, ref_sigmoid, rtol=1e-5, atol=1e-6), (
        out_sigmoid, ref_sigmoid)

    # 3) tiled path with ragged last tile (grid > 1, masked accumulation)
    B2, C2 = 40, 20
    k4, k5, k6 = jax.random.split(jax.random.PRNGKey(0), 3)
    logits2 = jax.random.normal(k4, (B2, C2), dtype=jnp.float32)
    tgt_idx2 = jax.random.randint(k5, (B2,), 0, C2, dtype=jnp.int32)
    tgt_mh2 = (jax.random.uniform(k6, (B2, C2)) > 0.5).astype(jnp.float32)

    fl_sm2 = FocalLoss(num_labels=C2, activation_type="softmax", tile_rows=16)
    out_sm2 = jax.block_until_ready(fl_sm2(logits2, tgt_idx2))
    ref_sm2 = _ref_softmax_focal(logits2, tgt_idx2, 0.25, 2.0, 1e-9, C2)
    assert jnp.allclose(out_sm2, ref_sm2, rtol=1e-5, atol=1e-6), (out_sm2, ref_sm2)

    fl_sg2 = FocalLoss(num_labels=C2, activation_type="sigmoid", tile_rows=16)
    out_sg2 = jax.block_until_ready(fl_sg2(logits2, tgt_mh2))
    ref_sg2 = _ref_sigmoid_focal(logits2, tgt_mh2, 0.25, 2.0, 1e-9)
    assert jnp.allclose(out_sg2, ref_sg2, rtol=1e-5, atol=1e-6), (out_sg2, ref_sg2)

    print("KERNEL_OK")
</pallas_src>

<mosaic_0001>
module attributes {stable_mosaic.version = 11 : i64} {
  func.func @_softmax_focal_kernel(%arg0: i32, %arg1: memref<8x16xf32, #tpu.memory_space<vmem>>, %arg2: memref<8x1xi32, #tpu.memory_space<vmem>>, %arg3: memref<1x1xf32, #tpu.memory_space<vmem>>, %arg4: memref<1x1xf32, #tpu.memory_space<vmem>>) attributes {dimension_semantics = [#tpu.dimension_semantics<arbitrary>], iteration_bounds = array<i64: 1>, scalar_prefetch = 0 : i64, scratch_operands = 1 : i64, tpu.core_type = #tpu.core_type<tc>, window_params = [{transform_indices = @transform_0, window_bounds = array<i64: 8, 16>}, {transform_indices = @transform_1, window_bounds = array<i64: 8, 1>}, {pipeline_mode = #tpu.pipeline_mode<synchronous>, transform_indices = @transform_2, window_bounds = array<i64: 1, 1>}]} {
    %c0_i32 = arith.constant 0 : i32
    %0 = arith.cmpi eq, %arg0, %c0_i32 : i32
    %1 = arith.extui %0 : i1 to i32
    %c0_i32_0 = arith.constant 0 : i32
    %2 = arith.cmpi ne, %1, %c0_i32_0 : i32
    scf.if %2 {
      %cst_21 = arith.constant 0.000000e+00 : f32
      %57 = vector.broadcast %cst_21 : f32 to vector<1x1xf32>
      %c0_22 = arith.constant 0 : index
      %c0_23 = arith.constant 0 : index
      %58 = vector.load %arg4[%c0_22, %c0_23] : memref<1x1xf32, #tpu.memory_space<vmem>>, vector<1x1xf32>
      tpu.vector_store %arg4[%c0_22, %c0_23], %57 {strides = array<i32>} : memref<1x1xf32, #tpu.memory_space<vmem>>, vector<1x1xf32>,
    } else {
    }
    %c0 = arith.constant 0 : index
    %c0_1 = arith.constant 0 : index
    %3 = vector.load %arg1[%c0, %c0_1] : memref<8x16xf32, #tpu.memory_space<vmem>>, vector<8x16xf32>
    %c0_2 = arith.constant 0 : index
    %c0_3 = arith.constant 0 : index
    %4 = vector.load %arg2[%c0_2, %c0_3] : memref<8x1xi32, #tpu.memory_space<vmem>>, vector<8x1xi32>
    %c8_i32 = arith.constant 8 : i32
    %5 = arith.muli %arg0, %c8_i32 : i32
    %6 = tpu.iota {dimensions = array<i32: 0>} : vector<8x1xi32>
    %7 = vector.broadcast %5 : i32 to vector<8x1xi32>
    %8 = arith.addi %7, %6 : vector<8x1xi32>
    %c8_i32_4 = arith.constant 8 : i32
    %9 = vector.broadcast %c8_i32_4 : i32 to vector<8x1xi32>
    %10 = arith.cmpi slt, %8, %9 : vector<8x1xi32>
    %cst = arith.constant 0.000000e+00 : f32
    %11 = vector.shape_cast %10 : vector<8x1xi1> to vector<8x1xi1>
    %12 = vector.broadcast %11 : vector<8x1xi1> to vector<8x16xi1>
    %13 = vector.broadcast %cst : f32 to vector<8x16xf32>
    %14 = arith.select %12, %3, %13 : vector<8x16xi1>, vector<8x16xf32>
    %c0_i32_5 = arith.constant 0 : i32
    %15 = vector.broadcast %c0_i32_5 : i32 to vector<8x1xi32>
    %16 = arith.select %10, %4, %15 : vector<8x1xi1>, vector<8x1xi32>
    %cst_6 = arith.constant dense<0xFF800000> : vector<8xf32>
    %17 = vector.multi_reduction <maximumf>, %14, %cst_6 [1] : vector<8x16xf32> to vector<8xf32>
    %18 = vector.shape_cast %17 : vector<8xf32> to vector<8x1xf32>
    %19 = vector.broadcast %18 : vector<8x1xf32> to vector<8x16xf32>
    %20 = arith.subf %14, %19 : vector<8x16xf32>
    %21 = math.exp %20 : vector<8x16xf32>
    %cst_7 = arith.constant dense<0.000000e+00> : vector<8xf32>
    %22 = vector.multi_reduction <add>, %21, %cst_7 [1] : vector<8x16xf32> to vector<8xf32>
    %23 = vector.shape_cast %22 : vector<8xf32> to vector<8x1xf32>
    %24 = tpu.iota {dimensions = array<i32: 1>} : vector<8x16xi32>
    %25 = vector.broadcast %16 : vector<8x1xi32> to vector<8x16xi32>
    %26 = arith.cmpi eq, %24, %25 : vector<8x16xi32>
    %cst_8 = arith.constant 0.000000e+00 : f32
    %27 = vector.broadcast %cst_8 : f32 to vector<8x16xf32>
    %28 = arith.select %26, %14, %27 : vector<8x16xi1>, vector<8x16xf32>
    %cst_9 = arith.constant dense<0.000000e+00> : vector<8xf32>
    %29 = vector.multi_reduction <add>, %28, %cst_9 [1] : vector<8x16xf32> to vector<8xf32>
    %30 = vector.shape_cast %29 : vector<8xf32> to vector<8x1xf32>
    %31 = arith.subf %30, %18 : vector<8x1xf32>
    %32 = math.log %23 : vector<8x1xf32>
    %33 = arith.subf %31, %32 : vector<8x1xf32>
    %34 = math.exp %33 : vector<8x1xf32>
    %cst_10 = arith.constant 1.000000e+00 : f32
    %35 = vector.broadcast %cst_10 : f32 to vector<8x1xf32>
    %36 = arith.subf %35, %34 : vector<8x1xf32>
    %cst_11 = arith.constant 0.000000e+00 : f32
    %37 = vector.broadcast %cst_11 : f32 to vector<8x1xf32>
    %38 = arith.maximumf %36, %37 : vector<8x1xf32>
    %39 = arith.mulf %38, %38 : vector<8x1xf32>
    %cst_12 = arith.constant -2.500000e-01 : f32
    %40 = vector.broadcast %cst_12 : f32 to vector<8x1xf32>
    %41 = arith.mulf %40, %39 : vector<8x1xf32>
    %cst_13 = arith.constant 9.99999971E-10 : f32
    %42 = vector.broadcast %cst_13 : f32 to vector<8x1xf32>
    %43 = arith.addf %34, %42 : vector<8x1xf32>
    %44 = math.log %43 : vector<8x1xf32>
    %45 = arith.mulf %41, %44 : vector<8x1xf32>
    %46 = arith.extui %10 : vector<8x1xi1> to vector<8x1xi32>
    %47 = arith.sitofp %46 : vector<8x1xi32> to vector<8x1xf32>
    %48 = arith.mulf %45, %47 : vector<8x1xf32>
    %c0_14 = arith.constant 0 : index
    %c0_15 = arith.constant 0 : index
    %49 = vector.load %arg4[%c0_14, %c0_15] : memref<1x1xf32, #tpu.memory_space<vmem>>, vector<1x1xf32>
    %cst_16 = arith.constant dense<0.000000e+00> : vector<1xf32>
    %50 = vector.multi_reduction <add>, %48, %cst_16 [0] : vector<8x1xf32> to vector<1xf32>
    %51 = vector.shape_cast %50 : vector<1xf32> to vector<1x1xf32>
    %52 = arith.addf %49, %51 : vector<1x1xf32>
    %c0_17 = arith.constant 0 : index
    %c0_18 = arith.constant 0 : index
    %53 = vector.load %arg4[%c0_17, %c0_18] : memref<1x1xf32, #tpu.memory_space<vmem>>, vector<1x1xf32>
    tpu.vector_store %arg4[%c0_17, %c0_18], %52 {strides = array<i32>} : memref<1x1xf32, #tpu.memory_space<vmem>>, vector<1x1xf32>,
    %c0_i32_19 = arith.constant 0 : i32
    %54 = arith.cmpi eq, %arg0, %c0_i32_19 : i32
    %55 = arith.extui %54 : i1 to i32
    %c0_i32_20 = arith.constant 0 : i32
    %56 = arith.cmpi ne, %55, %c0_i32_20 : i32
    scf.if %56 {
      %c0_21 = arith.constant 0 : index
      %c0_22 = arith.constant 0 : index
      %57 = vector.load %arg4[%c0_21, %c0_22] : memref<1x1xf32, #tpu.memory_space<vmem>>, vector<1x1xf32>
      %cst_23 = arith.constant 1.250000e-01 : f32
      %58 = vector.broadcast %cst_23 : f32 to vector<1x1xf32>
      %59 = arith.mulf %57, %58 : vector<1x1xf32>
      %c0_24 = arith.constant 0 : index
      %c0_25 = arith.constant 0 : index
      %60 = vector.load %arg3[%c0_24, %c0_25] : memref<1x1xf32, #tpu.memory_space<vmem>>, vector<1x1xf32>
      tpu.vector_store %arg3[%c0_24, %c0_25], %59 {strides = array<i32>} : memref<1x1xf32, #tpu.memory_space<vmem>>, vector<1x1xf32>,
    } else {
    }
    return
  }
  func.func @transform_0(%arg0: i32) -> (i32, i32) {
    %c0_i32 = arith.constant 0 : i32
    %c0_i32_0 = arith.constant 0 : i32
    return %arg0, %c0_i32 : i32, i32
  }
  func.func @transform_1(%arg0: i32) -> (i32, i32) {
    %c0_i32 = arith.constant 0 : i32
    %c0_i32_0 = arith.constant 0 : i32
    return %arg0, %c0_i32 : i32, i32
  }
  func.func @transform_2(%arg0: i32) -> (i32, i32) {
    %c0_i32 = arith.constant 0 : i32
    %c0_i32_0 = arith.constant 0 : i32
    %c0_i32_1 = arith.constant 0 : i32
    return %c0_i32, %c0_i32_0 : i32, i32
  }
}

</mosaic_0001>

<llo_original>
// kernel: tpu_custom_call.1
$region0: #{tpu_custom_call.1}
  #allocation0 [shape = 'u32[]', space=smem, size = 0x4, offset = 0x4, fixed_abs, tag = 'smem constant byte address 0x4 - core index']
  #allocation1 [shape = 'u32[144,128]{1,0:T(1,128)}', space=vmem, size = 0x12000, scoped, tag = 'internal scratch']
  #allocation2 [shape = 'f32[1,1]{1,0:T(1,128)}', space=vmem, size = 0x200, scoped, tag = 'scratch operand']
  %s0 = inlined_call_operand.vmem [shape: f32[8,16], index: 0, kind: input, shape index: {}]
  %s1 = inlined_call_operand.vmem [shape: s32[8,1], index: 1, kind: input, shape index: {}]
  %s2 = inlined_call_operand.hbm [shape: f32[1,1], index: 2, kind: output, shape index: {}]
  %s3 = sld [smem:[#allocation0]]
  $region26: #{tpu_custom_call.1} parent=0
    _
  %s5 = ssub.s32 1, %s3
  %s6 = scalar_select 0, %s5, %s3
  $region1: #{tpu_custom_call.1} parent=0
    #allocation3 [shape = 'u8[512]{0}', space=vmem, size = 0x400, scoped, tag = 'output window, operand 0, single buffered']
    #allocation4 [shape = 's32[1]{0}', space=sflag, size = 0x4, scoped, tag = 'scoped memory for tpu_custom_call.1']
    %7 = vsyncpa [#allocation4], 0
    // Predicated region
    $region2: #{tpu_custom_call.1} parent=1 // pred_check
      _
    $region3: #{tpu_custom_call.1} parent=1 // pred_check_branch
      %9 = sbr.rel (0) target = $region5
    $region4: #{tpu_custom_call.1} parent=1 // pred_region
      _
    $region5: #{tpu_custom_call.1} parent=1 // pred_fallthru
      _
    // Predicated region
    $region6: #{tpu_custom_call.1} parent=1 // pred_check
      _
    $region7: #{tpu_custom_call.1} parent=1 // pred_check_branch
      %11 = sbr.rel (0) target = $region9
    $region8: #{tpu_custom_call.1} parent=1 // pred_region
      _
    $region9: #{tpu_custom_call.1} parent=1 // pred_fallthru
      _
    %p12 = scmp.eq.s32.totalorder 0, 0
    // Predicated region
    $region10: #{tpu_custom_call.1} parent=1 // pred_check
      %p13 = pneg %p12
    $region11: #{tpu_custom_call.1} parent=1 // pred_check_branch
      %15 = sbr.rel (%p13) target = $region13
    $region12: #{tpu_custom_call.1} parent=1 // pred_region
      %vm16 = vcmask 0
      %17 = vst.msk [vmem:[#allocation2] sm:$0x1] %vm16, 0.0
    $region13: #{tpu_custom_call.1} parent=1 // pred_fallthru
      _
    %v18 = vld [vmem:[%s0] sm:$0xff]
    %v19 = vld [vmem:[%s1] sm:$0xff]
    %s20 = smul.u32 0, 8
    %v21 = vlaneseq
    %v22 = vshrl.u32 %v21, 7
    %v23 = vstv %s20
    %v24 = vadd.s32 %v23, %v22
    %vm25 = vcmp.lt.s32.totalorder %v24, 8
    %v26 = vsel %vm25, 1, 0
    %vm27 = vcmp.eq.s32.totalorder %v26, 1
    %v28 = vsel %vm27, %v18, 0.0
    %v29 = vsel %vm25, %v19, 0
    %vm30 = vcmask 130048
    %v31 = vsel %vm30, %v28, -inf
    %32 = vmax.xlane.f32.xlu0 %v31
    %v33 = vpop.xlane.xlu0 %32
    %v34 = vsub.f32 %v28, %v33
    %v35 = vmul.f32 %v34, 1.442695
    %v36 = vpow.pop %v35
    %v37 = vsel %vm30, %v36, 0.0
    %38 = vadd.xlane.f32.xlu0 %v37
    %v39 = vpop.xlane.xlu0 %38
    %v40 = vlaneseq
    %v41 = vand.u32 %v40, 127
    %42 = vset.pattern.permute.xlu0 0
    %43 = vperm.xlu0 %42, %v29
    %v44 = vpop.permute.xlu0 %43
    %vm45 = vcmp.eq.s32.totalorder %v41, %v44
    %v46 = vsel %vm45, %v28, 0.0
    %v47 = vsel %vm30, %v46, 0.0
    %48 = vadd.xlane.f32.xlu0 %v47
    %v49 = vpop.xlane.xlu0 %48
    %v50 = vsub.f32 %v49, %v33
    %v51 = vlog2.pop %v39
    %v52 = vmul.f32 %v51, 0.6931472
    %v53 = vsub.f32 %v50, %v52
    %v54 = vmul.f32 %v53, 1.442695
    %v55 = vpow.pop %v54
    %v56 = vsub.f32 1.0, %v55
    %v57 = vmax.f32 %v56, 0.0
    %v58 = vmul.f32 %v57, %v57
    %v59 = vmul.f32 %v58, -0.25
    %v60 = vadd.f32 %v55, 1e-09
    %v61 = vlog2.pop %v60
    %v62 = vmul.f32 %v61, 0.6931472
    %v63 = vmul.f32 %v59, %v62
    %v64 = vcvt.s32.f32 %v26
    %v65 = vmul.f32 %v63, %v64
    %v66 = vld [vmem:[#allocation2] sm:$0x1]
    %v67 = vrot.slane %v65, 4
    %v68 = vadd.f32 %v65, %v67
    %v69 = vrot.slane %v68, 2
    %v70 = vadd.f32 %v68, %v69
    %v71 = vrot.slane %v70, 1
    %v72 = vadd.f32 %v70, %v71
    %v73 = vadd.f32 %v66, %v72
    %vm74 = vcmask 0
    %75 = vst.msk [vmem:[#allocation2] sm:$0x1] %vm74, %v73
    // Predicated region
    $region14: #{tpu_custom_call.1} parent=1 // pred_check
      %p76 = pneg %p12
    $region15: #{tpu_custom_call.1} parent=1 // pred_check_branch
      %78 = sbr.rel (%p76) target = $region17
    $region16: #{tpu_custom_call.1} parent=1 // pred_region
      %v79 = vld [vmem:[#allocation2] sm:$0x1]
      %v80 = vmul.f32 %v79, 0.125
      %81 = vst.msk [vmem:[#allocation3] sm:$0x1] %vm74, %v80
    $region17: #{tpu_custom_call.1} parent=1 // pred_fallthru
      _
    // Predicated region
    $region18: #{tpu_custom_call.1} parent=1 // pred_check
      _
    $region19: #{tpu_custom_call.1} parent=1 // pred_check_branch
      %83 = sbr.rel (0) target = $region21
    $region20: #{tpu_custom_call.1} parent=1 // pred_region
      %s85 = ssub.s32 16, 16
      %86 = vsyncadd [#allocation4], %s85
      %s88 = sshll.u32 [#allocation3], 4
      %s89 = int_to_ptr.vmem [resolvable:$true] %s88
      %91 = dma.vmem_to_hbm [thread:$0]  %s89, 16, %s2, [#allocation4]
    $region21: #{tpu_custom_call.1} parent=1 // pred_fallthru
      _
    // Predicated region
    $region22: #{tpu_custom_call.1} parent=1 // pred_check
      _
    $region23: #{tpu_custom_call.1} parent=1 // pred_check_branch
      %93 = sbr.rel (0) target = $region25
    $region24: #{tpu_custom_call.1} parent=1 // pred_region
      %94 = dma.done [#allocation4], 16
    $region25: #{tpu_custom_call.1} parent=1 // pred_fallthru
      _
    %95 = vsyncpa [#allocation4], 1

</llo_original>
